<compile_context>
chip_gen: v5e
topology: v5e:2x2
jax: 0.10.0
libtpu: 0.0.40
codegen_flags: <defaults>
</compile_context>

<pallas_src>
import jax
import jax.numpy as jnp
from jax.experimental import pallas as pl
from jax.experimental.pallas import tpu as pltpu


def bow_kernel(words_ref, emb_hbm, bias_ref, out_ref, rows_ref, sems):
    # words_ref : (seq,)  int32 in SMEM (scalar prefetch) -> per-row DMA indices
    # emb_hbm   : (nwords, ntags) f32 ref left in HBM (memory_space=pl.ANY)
    # bias_ref  : (1, ntags) f32 in VMEM
    # out_ref   : (1, ntags) f32 in VMEM
    # rows_ref  : (seq, ntags) f32 VMEM scratch holding the gathered rows
    # sems      : (seq,) DMA semaphores, one per gathered row
    seq = rows_ref.shape[0]

    # Issue every row gather up front so all `seq` HBM->VMEM DMAs are in
    # flight simultaneously, then wait for all of them before the reduce.
    # TODO(synk): for very long sentences, replace this full unroll with a
    # fori_loop over fixed-size chunks + double buffering.
    copies = []
    for j in range(seq):                      # static (trace-time) unroll
        idx = words_ref[j]                    # dynamic scalar from SMEM
        cp = pltpu.make_async_copy(
            emb_hbm.at[pl.ds(idx, 1), :],     # one embedding row in HBM
            rows_ref.at[pl.ds(j, 1), :],      # row j of the VMEM scratch
            sems.at[j],
        )
        cp.start()
        copies.append(cp)
    for cp in copies:
        cp.wait()

    # Single sublane reduction over all gathered rows + bias add.
    out_ref[...] = bias_ref[...] + jnp.sum(rows_ref[...], axis=0, keepdims=True)


def bow_forward(words, embedding, bias):
    """words: (seq,) int; embedding: (nwords, ntags) f32; bias: (ntags,) f32.

    Returns (1, ntags) f32, identical to the torch forward (out.view(1, -1)).
    """
    seq = int(words.shape[0])
    nwords, ntags = embedding.shape

    embedding = embedding.astype(jnp.float32)          # no-op if already f32
    bias2d = bias.astype(jnp.float32).reshape(1, ntags)

    # Empty sentence: sum over zero rows is zero -> out == bias.
    if seq == 0:
        return bias2d

    # Clamp keeps the dynamic row DMA in-bounds. (torch nn.Embedding would
    # raise on an out-of-range index; we guard instead of faulting the chip.)
    words_i32 = jnp.clip(words.astype(jnp.int32), 0, nwords - 1)

    grid_spec = pltpu.PrefetchScalarGridSpec(
        num_scalar_prefetch=1,                # words -> SMEM
        grid=(1,),                            # single invocation, no per-token grid
        in_specs=[
            pl.BlockSpec(memory_space=pl.ANY),                   # table stays in HBM
            pl.BlockSpec((1, ntags), lambda i, words: (0, 0)),   # bias (full block)
        ],
        out_specs=pl.BlockSpec((1, ntags), lambda i, words: (0, 0)),
        scratch_shapes=[
            pltpu.VMEM((seq, ntags), jnp.float32),   # gathered rows
            pltpu.SemaphoreType.DMA((seq,)),         # one sem per row DMA
        ],
    )

    cost = pl.CostEstimate(
        flops=(seq + 1) * ntags,
        transcendentals=0,
        bytes_accessed=seq * ntags * 4      # gathered rows
                       + 2 * ntags * 4      # bias + output
                       + seq * 4,           # token ids
    )

    # TODO(synk): batching multiple sentences would add a leading "parallel"
    # grid axis (shards across both TensorCores on v7x); the reference module's
    # forward takes a single sentence, so output stays (1, ntags).
    return pl.pallas_call(
        bow_kernel,
        out_shape=jax.ShapeDtypeStruct((1, ntags), jnp.float32),
        grid_spec=grid_spec,
        compiler_params=pltpu.CompilerParams(
            dimension_semantics=("arbitrary",),
        ),
        cost_estimate=cost,
    )(words_i32, embedding, bias2d)


if __name__ == "__main__":
    nwords, ntags, seq = 1000, 16, 11

    key = jax.random.PRNGKey(0)
    k_words, k_emb, k_bias = jax.random.split(key, 3)

    # embedding: xavier_uniform_ (as in the module __init__). The module inits
    # bias to zeros; use small nonzero values here so the bias-add path is
    # actually exercised by the numerical check.
    xavier_bound = (6.0 / (nwords + ntags)) ** 0.5
    embedding = jax.random.uniform(
        k_emb, (nwords, ntags), dtype=jnp.float32,
        minval=-xavier_bound, maxval=xavier_bound)
    bias = 0.01 * jax.random.normal(k_bias, (ntags,), dtype=jnp.float32)

    words = jax.random.randint(k_words, (seq,), 0, nwords, dtype=jnp.int32)

    out = jax.block_until_ready(bow_forward(words, embedding, bias))

    # Pure-JAX reference: sum of gathered embedding rows + bias, shape (1, -1).
    ref = (embedding[words].sum(axis=0) + bias).reshape(1, -1)
    assert out.shape == (1, ntags), out.shape
    assert jnp.allclose(out, ref, atol=1e-5, rtol=1e-5), (out, ref)

    print("KERNEL_OK")
</pallas_src>

<mosaic_0001>
module attributes {stable_mosaic.version = 11 : i64} {
  func.func @bow_kernel(%arg0: i32, %arg1: memref<11xi32, #tpu.memory_space<smem>>, %arg2: memref<1000x16xf32, #tpu.memory_space<any>>, %arg3: memref<1x16xf32, #tpu.memory_space<vmem>>, %arg4: memref<1x16xf32, #tpu.memory_space<vmem>>, %arg5: memref<11x16xf32, #tpu.memory_space<vmem>>, %arg6: memref<11x!tpu.dma_semaphore, #tpu.memory_space<semaphore_mem>>) attributes {dimension_semantics = [#tpu.dimension_semantics<arbitrary>], iteration_bounds = array<i64: 1>, scalar_prefetch = 1 : i64, scratch_operands = 2 : i64, tpu.core_type = #tpu.core_type<tc>, window_params = [{}, {pipeline_mode = #tpu.pipeline_mode<synchronous>, transform_indices = @transform_1, window_bounds = array<i64: 1, 16>}, {pipeline_mode = #tpu.pipeline_mode<synchronous>, transform_indices = @transform_2, window_bounds = array<i64: 1, 16>}]} {
    %c0 = arith.constant 0 : index
    %0 = memref.load %arg1[%c0] : memref<11xi32, #tpu.memory_space<smem>>
    %c0_i32 = arith.constant 0 : i32
    %c0_i32_0 = arith.constant 0 : i32
    %1 = tpu.memref_slice %arg2[%0, %c0_i32_0] : memref<1000x16xf32, #tpu.memory_space<any>> -> memref<1x16xf32, #tpu.memory_space<any>>
    %c0_i32_1 = arith.constant 0 : i32
    %c0_i32_2 = arith.constant 0 : i32
    %2 = tpu.memref_slice %arg5[%c0_i32_1, %c0_i32_2] : memref<11x16xf32, #tpu.memory_space<vmem>> -> memref<1x16xf32, #tpu.memory_space<vmem>>
    %3 = tpu.memref_slice %arg6[%c0_i32] : memref<11x!tpu.dma_semaphore, #tpu.memory_space<semaphore_mem>> -> memref<1x!tpu.dma_semaphore, #tpu.memory_space<semaphore_mem>>
    %4 = tpu.memref_squeeze %3 : memref<1x!tpu.dma_semaphore, #tpu.memory_space<semaphore_mem>> -> memref<!tpu.dma_semaphore, #tpu.memory_space<semaphore_mem>>
    tpu.enqueue_dma source(%1 : memref<1x16xf32, #tpu.memory_space<any>>) target(%2 : memref<1x16xf32, #tpu.memory_space<vmem>>) target_semaphore(%4 : memref<!tpu.dma_semaphore, #tpu.memory_space<semaphore_mem>>)
    %c1 = arith.constant 1 : index
    %5 = memref.load %arg1[%c1] : memref<11xi32, #tpu.memory_space<smem>>
    %c1_i32 = arith.constant 1 : i32
    %c0_i32_3 = arith.constant 0 : i32
    %6 = tpu.memref_slice %arg2[%5, %c0_i32_3] : memref<1000x16xf32, #tpu.memory_space<any>> -> memref<1x16xf32, #tpu.memory_space<any>>
    %c1_i32_4 = arith.constant 1 : i32
    %c0_i32_5 = arith.constant 0 : i32
    %7 = tpu.memref_slice %arg5[%c1_i32_4, %c0_i32_5] : memref<11x16xf32, #tpu.memory_space<vmem>> -> memref<1x16xf32, #tpu.memory_space<vmem>>
    %8 = tpu.memref_slice %arg6[%c1_i32] : memref<11x!tpu.dma_semaphore, #tpu.memory_space<semaphore_mem>> -> memref<1x!tpu.dma_semaphore, #tpu.memory_space<semaphore_mem>>
    %9 = tpu.memref_squeeze %8 : memref<1x!tpu.dma_semaphore, #tpu.memory_space<semaphore_mem>> -> memref<!tpu.dma_semaphore, #tpu.memory_space<semaphore_mem>>
    tpu.enqueue_dma source(%6 : memref<1x16xf32, #tpu.memory_space<any>>) target(%7 : memref<1x16xf32, #tpu.memory_space<vmem>>) target_semaphore(%9 : memref<!tpu.dma_semaphore, #tpu.memory_space<semaphore_mem>>)
    %c2 = arith.constant 2 : index
    %10 = memref.load %arg1[%c2] : memref<11xi32, #tpu.memory_space<smem>>
    %c2_i32 = arith.constant 2 : i32
    %c0_i32_6 = arith.constant 0 : i32
    %11 = tpu.memref_slice %arg2[%10, %c0_i32_6] : memref<1000x16xf32, #tpu.memory_space<any>> -> memref<1x16xf32, #tpu.memory_space<any>>
    %c2_i32_7 = arith.constant 2 : i32
    %c0_i32_8 = arith.constant 0 : i32
    %12 = tpu.memref_slice %arg5[%c2_i32_7, %c0_i32_8] : memref<11x16xf32, #tpu.memory_space<vmem>> -> memref<1x16xf32, #tpu.memory_space<vmem>>
    %13 = tpu.memref_slice %arg6[%c2_i32] : memref<11x!tpu.dma_semaphore, #tpu.memory_space<semaphore_mem>> -> memref<1x!tpu.dma_semaphore, #tpu.memory_space<semaphore_mem>>
    %14 = tpu.memref_squeeze %13 : memref<1x!tpu.dma_semaphore, #tpu.memory_space<semaphore_mem>> -> memref<!tpu.dma_semaphore, #tpu.memory_space<semaphore_mem>>
    tpu.enqueue_dma source(%11 : memref<1x16xf32, #tpu.memory_space<any>>) target(%12 : memref<1x16xf32, #tpu.memory_space<vmem>>) target_semaphore(%14 : memref<!tpu.dma_semaphore, #tpu.memory_space<semaphore_mem>>)
    %c3 = arith.constant 3 : index
    %15 = memref.load %arg1[%c3] : memref<11xi32, #tpu.memory_space<smem>>
    %c3_i32 = arith.constant 3 : i32
    %c0_i32_9 = arith.constant 0 : i32
    %16 = tpu.memref_slice %arg2[%15, %c0_i32_9] : memref<1000x16xf32, #tpu.memory_space<any>> -> memref<1x16xf32, #tpu.memory_space<any>>
    %c3_i32_10 = arith.constant 3 : i32
    %c0_i32_11 = arith.constant 0 : i32
    %17 = tpu.memref_slice %arg5[%c3_i32_10, %c0_i32_11] : memref<11x16xf32, #tpu.memory_space<vmem>> -> memref<1x16xf32, #tpu.memory_space<vmem>>
    %18 = tpu.memref_slice %arg6[%c3_i32] : memref<11x!tpu.dma_semaphore, #tpu.memory_space<semaphore_mem>> -> memref<1x!tpu.dma_semaphore, #tpu.memory_space<semaphore_mem>>
    %19 = tpu.memref_squeeze %18 : memref<1x!tpu.dma_semaphore, #tpu.memory_space<semaphore_mem>> -> memref<!tpu.dma_semaphore, #tpu.memory_space<semaphore_mem>>
    tpu.enqueue_dma source(%16 : memref<1x16xf32, #tpu.memory_space<any>>) target(%17 : memref<1x16xf32, #tpu.memory_space<vmem>>) target_semaphore(%19 : memref<!tpu.dma_semaphore, #tpu.memory_space<semaphore_mem>>)
    %c4 = arith.constant 4 : index
    %20 = memref.load %arg1[%c4] : memref<11xi32, #tpu.memory_space<smem>>
    %c4_i32 = arith.constant 4 : i32
    %c0_i32_12 = arith.constant 0 : i32
    %21 = tpu.memref_slice %arg2[%20, %c0_i32_12] : memref<1000x16xf32, #tpu.memory_space<any>> -> memref<1x16xf32, #tpu.memory_space<any>>
    %c4_i32_13 = arith.constant 4 : i32
    %c0_i32_14 = arith.constant 0 : i32
    %22 = tpu.memref_slice %arg5[%c4_i32_13, %c0_i32_14] : memref<11x16xf32, #tpu.memory_space<vmem>> -> memref<1x16xf32, #tpu.memory_space<vmem>>
    %23 = tpu.memref_slice %arg6[%c4_i32] : memref<11x!tpu.dma_semaphore, #tpu.memory_space<semaphore_mem>> -> memref<1x!tpu.dma_semaphore, #tpu.memory_space<semaphore_mem>>
    %24 = tpu.memref_squeeze %23 : memref<1x!tpu.dma_semaphore, #tpu.memory_space<semaphore_mem>> -> memref<!tpu.dma_semaphore, #tpu.memory_space<semaphore_mem>>
    tpu.enqueue_dma source(%21 : memref<1x16xf32, #tpu.memory_space<any>>) target(%22 : memref<1x16xf32, #tpu.memory_space<vmem>>) target_semaphore(%24 : memref<!tpu.dma_semaphore, #tpu.memory_space<semaphore_mem>>)
    %c5 = arith.constant 5 : index
    %25 = memref.load %arg1[%c5] : memref<11xi32, #tpu.memory_space<smem>>
    %c5_i32 = arith.constant 5 : i32
    %c0_i32_15 = arith.constant 0 : i32
    %26 = tpu.memref_slice %arg2[%25, %c0_i32_15] : memref<1000x16xf32, #tpu.memory_space<any>> -> memref<1x16xf32, #tpu.memory_space<any>>
    %c5_i32_16 = arith.constant 5 : i32
    %c0_i32_17 = arith.constant 0 : i32
    %27 = tpu.memref_slice %arg5[%c5_i32_16, %c0_i32_17] : memref<11x16xf32, #tpu.memory_space<vmem>> -> memref<1x16xf32, #tpu.memory_space<vmem>>
    %28 = tpu.memref_slice %arg6[%c5_i32] : memref<11x!tpu.dma_semaphore, #tpu.memory_space<semaphore_mem>> -> memref<1x!tpu.dma_semaphore, #tpu.memory_space<semaphore_mem>>
    %29 = tpu.memref_squeeze %28 : memref<1x!tpu.dma_semaphore, #tpu.memory_space<semaphore_mem>> -> memref<!tpu.dma_semaphore, #tpu.memory_space<semaphore_mem>>
    tpu.enqueue_dma source(%26 : memref<1x16xf32, #tpu.memory_space<any>>) target(%27 : memref<1x16xf32, #tpu.memory_space<vmem>>) target_semaphore(%29 : memref<!tpu.dma_semaphore, #tpu.memory_space<semaphore_mem>>)
    %c6 = arith.constant 6 : index
    %30 = memref.load %arg1[%c6] : memref<11xi32, #tpu.memory_space<smem>>
    %c6_i32 = arith.constant 6 : i32
    %c0_i32_18 = arith.constant 0 : i32
    %31 = tpu.memref_slice %arg2[%30, %c0_i32_18] : memref<1000x16xf32, #tpu.memory_space<any>> -> memref<1x16xf32, #tpu.memory_space<any>>
    %c6_i32_19 = arith.constant 6 : i32
    %c0_i32_20 = arith.constant 0 : i32
    %32 = tpu.memref_slice %arg5[%c6_i32_19, %c0_i32_20] : memref<11x16xf32, #tpu.memory_space<vmem>> -> memref<1x16xf32, #tpu.memory_space<vmem>>
    %33 = tpu.memref_slice %arg6[%c6_i32] : memref<11x!tpu.dma_semaphore, #tpu.memory_space<semaphore_mem>> -> memref<1x!tpu.dma_semaphore, #tpu.memory_space<semaphore_mem>>
    %34 = tpu.memref_squeeze %33 : memref<1x!tpu.dma_semaphore, #tpu.memory_space<semaphore_mem>> -> memref<!tpu.dma_semaphore, #tpu.memory_space<semaphore_mem>>
    tpu.enqueue_dma source(%31 : memref<1x16xf32, #tpu.memory_space<any>>) target(%32 : memref<1x16xf32, #tpu.memory_space<vmem>>) target_semaphore(%34 : memref<!tpu.dma_semaphore, #tpu.memory_space<semaphore_mem>>)
    %c7 = arith.constant 7 : index
    %35 = memref.load %arg1[%c7] : memref<11xi32, #tpu.memory_space<smem>>
    %c7_i32 = arith.constant 7 : i32
    %c0_i32_21 = arith.constant 0 : i32
    %36 = tpu.memref_slice %arg2[%35, %c0_i32_21] : memref<1000x16xf32, #tpu.memory_space<any>> -> memref<1x16xf32, #tpu.memory_space<any>>
    %c7_i32_22 = arith.constant 7 : i32
    %c0_i32_23 = arith.constant 0 : i32
    %37 = tpu.memref_slice %arg5[%c7_i32_22, %c0_i32_23] : memref<11x16xf32, #tpu.memory_space<vmem>> -> memref<1x16xf32, #tpu.memory_space<vmem>>
    %38 = tpu.memref_slice %arg6[%c7_i32] : memref<11x!tpu.dma_semaphore, #tpu.memory_space<semaphore_mem>> -> memref<1x!tpu.dma_semaphore, #tpu.memory_space<semaphore_mem>>
    %39 = tpu.memref_squeeze %38 : memref<1x!tpu.dma_semaphore, #tpu.memory_space<semaphore_mem>> -> memref<!tpu.dma_semaphore, #tpu.memory_space<semaphore_mem>>
    tpu.enqueue_dma source(%36 : memref<1x16xf32, #tpu.memory_space<any>>) target(%37 : memref<1x16xf32, #tpu.memory_space<vmem>>) target_semaphore(%39 : memref<!tpu.dma_semaphore, #tpu.memory_space<semaphore_mem>>)
    %c8 = arith.constant 8 : index
    %40 = memref.load %arg1[%c8] : memref<11xi32, #tpu.memory_space<smem>>
    %c8_i32 = arith.constant 8 : i32
    %c0_i32_24 = arith.constant 0 : i32
    %41 = tpu.memref_slice %arg2[%40, %c0_i32_24] : memref<1000x16xf32, #tpu.memory_space<any>> -> memref<1x16xf32, #tpu.memory_space<any>>
    %c8_i32_25 = arith.constant 8 : i32
    %c0_i32_26 = arith.constant 0 : i32
    %42 = tpu.memref_slice %arg5[%c8_i32_25, %c0_i32_26] : memref<11x16xf32, #tpu.memory_space<vmem>> -> memref<1x16xf32, #tpu.memory_space<vmem>>
    %43 = tpu.memref_slice %arg6[%c8_i32] : memref<11x!tpu.dma_semaphore, #tpu.memory_space<semaphore_mem>> -> memref<1x!tpu.dma_semaphore, #tpu.memory_space<semaphore_mem>>
    %44 = tpu.memref_squeeze %43 : memref<1x!tpu.dma_semaphore, #tpu.memory_space<semaphore_mem>> -> memref<!tpu.dma_semaphore, #tpu.memory_space<semaphore_mem>>
    tpu.enqueue_dma source(%41 : memref<1x16xf32, #tpu.memory_space<any>>) target(%42 : memref<1x16xf32, #tpu.memory_space<vmem>>) target_semaphore(%44 : memref<!tpu.dma_semaphore, #tpu.memory_space<semaphore_mem>>)
    %c9 = arith.constant 9 : index
    %45 = memref.load %arg1[%c9] : memref<11xi32, #tpu.memory_space<smem>>
    %c9_i32 = arith.constant 9 : i32
    %c0_i32_27 = arith.constant 0 : i32
    %46 = tpu.memref_slice %arg2[%45, %c0_i32_27] : memref<1000x16xf32, #tpu.memory_space<any>> -> memref<1x16xf32, #tpu.memory_space<any>>
    %c9_i32_28 = arith.constant 9 : i32
    %c0_i32_29 = arith.constant 0 : i32
    %47 = tpu.memref_slice %arg5[%c9_i32_28, %c0_i32_29] : memref<11x16xf32, #tpu.memory_space<vmem>> -> memref<1x16xf32, #tpu.memory_space<vmem>>
    %48 = tpu.memref_slice %arg6[%c9_i32] : memref<11x!tpu.dma_semaphore, #tpu.memory_space<semaphore_mem>> -> memref<1x!tpu.dma_semaphore, #tpu.memory_space<semaphore_mem>>
    %49 = tpu.memref_squeeze %48 : memref<1x!tpu.dma_semaphore, #tpu.memory_space<semaphore_mem>> -> memref<!tpu.dma_semaphore, #tpu.memory_space<semaphore_mem>>
    tpu.enqueue_dma source(%46 : memref<1x16xf32, #tpu.memory_space<any>>) target(%47 : memref<1x16xf32, #tpu.memory_space<vmem>>) target_semaphore(%49 : memref<!tpu.dma_semaphore, #tpu.memory_space<semaphore_mem>>)
    %c10 = arith.constant 10 : index
    %50 = memref.load %arg1[%c10] : memref<11xi32, #tpu.memory_space<smem>>
    %c10_i32 = arith.constant 10 : i32
    %c0_i32_30 = arith.constant 0 : i32
    %51 = tpu.memref_slice %arg2[%50, %c0_i32_30] : memref<1000x16xf32, #tpu.memory_space<any>> -> memref<1x16xf32, #tpu.memory_space<any>>
    %c10_i32_31 = arith.constant 10 : i32
    %c0_i32_32 = arith.constant 0 : i32
    %52 = tpu.memref_slice %arg5[%c10_i32_31, %c0_i32_32] : memref<11x16xf32, #tpu.memory_space<vmem>> -> memref<1x16xf32, #tpu.memory_space<vmem>>
    %53 = tpu.memref_slice %arg6[%c10_i32] : memref<11x!tpu.dma_semaphore, #tpu.memory_space<semaphore_mem>> -> memref<1x!tpu.dma_semaphore, #tpu.memory_space<semaphore_mem>>
    %54 = tpu.memref_squeeze %53 : memref<1x!tpu.dma_semaphore, #tpu.memory_space<semaphore_mem>> -> memref<!tpu.dma_semaphore, #tpu.memory_space<semaphore_mem>>
    tpu.enqueue_dma source(%51 : memref<1x16xf32, #tpu.memory_space<any>>) target(%52 : memref<1x16xf32, #tpu.memory_space<vmem>>) target_semaphore(%54 : memref<!tpu.dma_semaphore, #tpu.memory_space<semaphore_mem>>)
    %c0_i32_33 = arith.constant 0 : i32
    %c0_i32_34 = arith.constant 0 : i32
    %55 = tpu.memref_slice %arg2[%0, %c0_i32_34] : memref<1000x16xf32, #tpu.memory_space<any>> -> memref<1x16xf32, #tpu.memory_space<any>>
    %c0_i32_35 = arith.constant 0 : i32
    %c0_i32_36 = arith.constant 0 : i32
    %56 = tpu.memref_slice %arg5[%c0_i32_35, %c0_i32_36] : memref<11x16xf32, #tpu.memory_space<vmem>> -> memref<1x16xf32, #tpu.memory_space<vmem>>
    %57 = tpu.memref_slice %arg6[%c0_i32_33] : memref<11x!tpu.dma_semaphore, #tpu.memory_space<semaphore_mem>> -> memref<1x!tpu.dma_semaphore, #tpu.memory_space<semaphore_mem>>
    %58 = tpu.memref_squeeze %57 : memref<1x!tpu.dma_semaphore, #tpu.memory_space<semaphore_mem>> -> memref<!tpu.dma_semaphore, #tpu.memory_space<semaphore_mem>>
    tpu.wait_dma2 semaphore(%58 : memref<!tpu.dma_semaphore, #tpu.memory_space<semaphore_mem>>) src(%55 : memref<1x16xf32, #tpu.memory_space<any>>) dst(%56 : memref<1x16xf32, #tpu.memory_space<vmem>>)
    %c1_i32_37 = arith.constant 1 : i32
    %c0_i32_38 = arith.constant 0 : i32
    %59 = tpu.memref_slice %arg2[%5, %c0_i32_38] : memref<1000x16xf32, #tpu.memory_space<any>> -> memref<1x16xf32, #tpu.memory_space<any>>
    %c1_i32_39 = arith.constant 1 : i32
    %c0_i32_40 = arith.constant 0 : i32
    %60 = tpu.memref_slice %arg5[%c1_i32_39, %c0_i32_40] : memref<11x16xf32, #tpu.memory_space<vmem>> -> memref<1x16xf32, #tpu.memory_space<vmem>>
    %61 = tpu.memref_slice %arg6[%c1_i32_37] : memref<11x!tpu.dma_semaphore, #tpu.memory_space<semaphore_mem>> -> memref<1x!tpu.dma_semaphore, #tpu.memory_space<semaphore_mem>>
    %62 = tpu.memref_squeeze %61 : memref<1x!tpu.dma_semaphore, #tpu.memory_space<semaphore_mem>> -> memref<!tpu.dma_semaphore, #tpu.memory_space<semaphore_mem>>
    tpu.wait_dma2 semaphore(%62 : memref<!tpu.dma_semaphore, #tpu.memory_space<semaphore_mem>>) src(%59 : memref<1x16xf32, #tpu.memory_space<any>>) dst(%60 : memref<1x16xf32, #tpu.memory_space<vmem>>)
    %c2_i32_41 = arith.constant 2 : i32
    %c0_i32_42 = arith.constant 0 : i32
    %63 = tpu.memref_slice %arg2[%10, %c0_i32_42] : memref<1000x16xf32, #tpu.memory_space<any>> -> memref<1x16xf32, #tpu.memory_space<any>>
    %c2_i32_43 = arith.constant 2 : i32
    %c0_i32_44 = arith.constant 0 : i32
    %64 = tpu.memref_slice %arg5[%c2_i32_43, %c0_i32_44] : memref<11x16xf32, #tpu.memory_space<vmem>> -> memref<1x16xf32, #tpu.memory_space<vmem>>
    %65 = tpu.memref_slice %arg6[%c2_i32_41] : memref<11x!tpu.dma_semaphore, #tpu.memory_space<semaphore_mem>> -> memref<1x!tpu.dma_semaphore, #tpu.memory_space<semaphore_mem>>
    %66 = tpu.memref_squeeze %65 : memref<1x!tpu.dma_semaphore, #tpu.memory_space<semaphore_mem>> -> memref<!tpu.dma_semaphore, #tpu.memory_space<semaphore_mem>>
    tpu.wait_dma2 semaphore(%66 : memref<!tpu.dma_semaphore, #tpu.memory_space<semaphore_mem>>) src(%63 : memref<1x16xf32, #tpu.memory_space<any>>) dst(%64 : memref<1x16xf32, #tpu.memory_space<vmem>>)
    %c3_i32_45 = arith.constant 3 : i32
    %c0_i32_46 = arith.constant 0 : i32
    %67 = tpu.memref_slice %arg2[%15, %c0_i32_46] : memref<1000x16xf32, #tpu.memory_space<any>> -> memref<1x16xf32, #tpu.memory_space<any>>
    %c3_i32_47 = arith.constant 3 : i32
    %c0_i32_48 = arith.constant 0 : i32
    %68 = tpu.memref_slice %arg5[%c3_i32_47, %c0_i32_48] : memref<11x16xf32, #tpu.memory_space<vmem>> -> memref<1x16xf32, #tpu.memory_space<vmem>>
    %69 = tpu.memref_slice %arg6[%c3_i32_45] : memref<11x!tpu.dma_semaphore, #tpu.memory_space<semaphore_mem>> -> memref<1x!tpu.dma_semaphore, #tpu.memory_space<semaphore_mem>>
    %70 = tpu.memref_squeeze %69 : memref<1x!tpu.dma_semaphore, #tpu.memory_space<semaphore_mem>> -> memref<!tpu.dma_semaphore, #tpu.memory_space<semaphore_mem>>
    tpu.wait_dma2 semaphore(%70 : memref<!tpu.dma_semaphore, #tpu.memory_space<semaphore_mem>>) src(%67 : memref<1x16xf32, #tpu.memory_space<any>>) dst(%68 : memref<1x16xf32, #tpu.memory_space<vmem>>)
    %c4_i32_49 = arith.constant 4 : i32
    %c0_i32_50 = arith.constant 0 : i32
    %71 = tpu.memref_slice %arg2[%20, %c0_i32_50] : memref<1000x16xf32, #tpu.memory_space<any>> -> memref<1x16xf32, #tpu.memory_space<any>>
    %c4_i32_51 = arith.constant 4 : i32
    %c0_i32_52 = arith.constant 0 : i32
    %72 = tpu.memref_slice %arg5[%c4_i32_51, %c0_i32_52] : memref<11x16xf32, #tpu.memory_space<vmem>> -> memref<1x16xf32, #tpu.memory_space<vmem>>
    %73 = tpu.memref_slice %arg6[%c4_i32_49] : memref<11x!tpu.dma_semaphore, #tpu.memory_space<semaphore_mem>> -> memref<1x!tpu.dma_semaphore, #tpu.memory_space<semaphore_mem>>
    %74 = tpu.memref_squeeze %73 : memref<1x!tpu.dma_semaphore, #tpu.memory_space<semaphore_mem>> -> memref<!tpu.dma_semaphore, #tpu.memory_space<semaphore_mem>>
    tpu.wait_dma2 semaphore(%74 : memref<!tpu.dma_semaphore, #tpu.memory_space<semaphore_mem>>) src(%71 : memref<1x16xf32, #tpu.memory_space<any>>) dst(%72 : memref<1x16xf32, #tpu.memory_space<vmem>>)
    %c5_i32_53 = arith.constant 5 : i32
    %c0_i32_54 = arith.constant 0 : i32
    %75 = tpu.memref_slice %arg2[%25, %c0_i32_54] : memref<1000x16xf32, #tpu.memory_space<any>> -> memref<1x16xf32, #tpu.memory_space<any>>
    %c5_i32_55 = arith.constant 5 : i32
    %c0_i32_56 = arith.constant 0 : i32
    %76 = tpu.memref_slice %arg5[%c5_i32_55, %c0_i32_56] : memref<11x16xf32, #tpu.memory_space<vmem>> -> memref<1x16xf32, #tpu.memory_space<vmem>>
    %77 = tpu.memref_slice %arg6[%c5_i32_53] : memref<11x!tpu.dma_semaphore, #tpu.memory_space<semaphore_mem>> -> memref<1x!tpu.dma_semaphore, #tpu.memory_space<semaphore_mem>>
    %78 = tpu.memref_squeeze %77 : memref<1x!tpu.dma_semaphore, #tpu.memory_space<semaphore_mem>> -> memref<!tpu.dma_semaphore, #tpu.memory_space<semaphore_mem>>
    tpu.wait_dma2 semaphore(%78 : memref<!tpu.dma_semaphore, #tpu.memory_space<semaphore_mem>>) src(%75 : memref<1x16xf32, #tpu.memory_space<any>>) dst(%76 : memref<1x16xf32, #tpu.memory_space<vmem>>)
    %c6_i32_57 = arith.constant 6 : i32
    %c0_i32_58 = arith.constant 0 : i32
    %79 = tpu.memref_slice %arg2[%30, %c0_i32_58] : memref<1000x16xf32, #tpu.memory_space<any>> -> memref<1x16xf32, #tpu.memory_space<any>>
    %c6_i32_59 = arith.constant 6 : i32
    %c0_i32_60 = arith.constant 0 : i32
    %80 = tpu.memref_slice %arg5[%c6_i32_59, %c0_i32_60] : memref<11x16xf32, #tpu.memory_space<vmem>> -> memref<1x16xf32, #tpu.memory_space<vmem>>
    %81 = tpu.memref_slice %arg6[%c6_i32_57] : memref<11x!tpu.dma_semaphore, #tpu.memory_space<semaphore_mem>> -> memref<1x!tpu.dma_semaphore, #tpu.memory_space<semaphore_mem>>
    %82 = tpu.memref_squeeze %81 : memref<1x!tpu.dma_semaphore, #tpu.memory_space<semaphore_mem>> -> memref<!tpu.dma_semaphore, #tpu.memory_space<semaphore_mem>>
    tpu.wait_dma2 semaphore(%82 : memref<!tpu.dma_semaphore, #tpu.memory_space<semaphore_mem>>) src(%79 : memref<1x16xf32, #tpu.memory_space<any>>) dst(%80 : memref<1x16xf32, #tpu.memory_space<vmem>>)
    %c7_i32_61 = arith.constant 7 : i32
    %c0_i32_62 = arith.constant 0 : i32
    %83 = tpu.memref_slice %arg2[%35, %c0_i32_62] : memref<1000x16xf32, #tpu.memory_space<any>> -> memref<1x16xf32, #tpu.memory_space<any>>
    %c7_i32_63 = arith.constant 7 : i32
    %c0_i32_64 = arith.constant 0 : i32
    %84 = tpu.memref_slice %arg5[%c7_i32_63, %c0_i32_64] : memref<11x16xf32, #tpu.memory_space<vmem>> -> memref<1x16xf32, #tpu.memory_space<vmem>>
    %85 = tpu.memref_slice %arg6[%c7_i32_61] : memref<11x!tpu.dma_semaphore, #tpu.memory_space<semaphore_mem>> -> memref<1x!tpu.dma_semaphore, #tpu.memory_space<semaphore_mem>>
    %86 = tpu.memref_squeeze %85 : memref<1x!tpu.dma_semaphore, #tpu.memory_space<semaphore_mem>> -> memref<!tpu.dma_semaphore, #tpu.memory_space<semaphore_mem>>
    tpu.wait_dma2 semaphore(%86 : memref<!tpu.dma_semaphore, #tpu.memory_space<semaphore_mem>>) src(%83 : memref<1x16xf32, #tpu.memory_space<any>>) dst(%84 : memref<1x16xf32, #tpu.memory_space<vmem>>)
    %c8_i32_65 = arith.constant 8 : i32
    %c0_i32_66 = arith.constant 0 : i32
    %87 = tpu.memref_slice %arg2[%40, %c0_i32_66] : memref<1000x16xf32, #tpu.memory_space<any>> -> memref<1x16xf32, #tpu.memory_space<any>>
    %c8_i32_67 = arith.constant 8 : i32
    %c0_i32_68 = arith.constant 0 : i32
    %88 = tpu.memref_slice %arg5[%c8_i32_67, %c0_i32_68] : memref<11x16xf32, #tpu.memory_space<vmem>> -> memref<1x16xf32, #tpu.memory_space<vmem>>
    %89 = tpu.memref_slice %arg6[%c8_i32_65] : memref<11x!tpu.dma_semaphore, #tpu.memory_space<semaphore_mem>> -> memref<1x!tpu.dma_semaphore, #tpu.memory_space<semaphore_mem>>
    %90 = tpu.memref_squeeze %89 : memref<1x!tpu.dma_semaphore, #tpu.memory_space<semaphore_mem>> -> memref<!tpu.dma_semaphore, #tpu.memory_space<semaphore_mem>>
    tpu.wait_dma2 semaphore(%90 : memref<!tpu.dma_semaphore, #tpu.memory_space<semaphore_mem>>) src(%87 : memref<1x16xf32, #tpu.memory_space<any>>) dst(%88 : memref<1x16xf32, #tpu.memory_space<vmem>>)
    %c9_i32_69 = arith.constant 9 : i32
    %c0_i32_70 = arith.constant 0 : i32
    %91 = tpu.memref_slice %arg2[%45, %c0_i32_70] : memref<1000x16xf32, #tpu.memory_space<any>> -> memref<1x16xf32, #tpu.memory_space<any>>
    %c9_i32_71 = arith.constant 9 : i32
    %c0_i32_72 = arith.constant 0 : i32
    %92 = tpu.memref_slice %arg5[%c9_i32_71, %c0_i32_72] : memref<11x16xf32, #tpu.memory_space<vmem>> -> memref<1x16xf32, #tpu.memory_space<vmem>>
    %93 = tpu.memref_slice %arg6[%c9_i32_69] : memref<11x!tpu.dma_semaphore, #tpu.memory_space<semaphore_mem>> -> memref<1x!tpu.dma_semaphore, #tpu.memory_space<semaphore_mem>>
    %94 = tpu.memref_squeeze %93 : memref<1x!tpu.dma_semaphore, #tpu.memory_space<semaphore_mem>> -> memref<!tpu.dma_semaphore, #tpu.memory_space<semaphore_mem>>
    tpu.wait_dma2 semaphore(%94 : memref<!tpu.dma_semaphore, #tpu.memory_space<semaphore_mem>>) src(%91 : memref<1x16xf32, #tpu.memory_space<any>>) dst(%92 : memref<1x16xf32, #tpu.memory_space<vmem>>)
    %c10_i32_73 = arith.constant 10 : i32
    %c0_i32_74 = arith.constant 0 : i32
    %95 = tpu.memref_slice %arg2[%50, %c0_i32_74] : memref<1000x16xf32, #tpu.memory_space<any>> -> memref<1x16xf32, #tpu.memory_space<any>>
    %c10_i32_75 = arith.constant 10 : i32
    %c0_i32_76 = arith.constant 0 : i32
    %96 = tpu.memref_slice %arg5[%c10_i32_75, %c0_i32_76] : memref<11x16xf32, #tpu.memory_space<vmem>> -> memref<1x16xf32, #tpu.memory_space<vmem>>
    %97 = tpu.memref_slice %arg6[%c10_i32_73] : memref<11x!tpu.dma_semaphore, #tpu.memory_space<semaphore_mem>> -> memref<1x!tpu.dma_semaphore, #tpu.memory_space<semaphore_mem>>
    %98 = tpu.memref_squeeze %97 : memref<1x!tpu.dma_semaphore, #tpu.memory_space<semaphore_mem>> -> memref<!tpu.dma_semaphore, #tpu.memory_space<semaphore_mem>>
    tpu.wait_dma2 semaphore(%98 : memref<!tpu.dma_semaphore, #tpu.memory_space<semaphore_mem>>) src(%95 : memref<1x16xf32, #tpu.memory_space<any>>) dst(%96 : memref<1x16xf32, #tpu.memory_space<vmem>>)
    %c0_77 = arith.constant 0 : index
    %c0_78 = arith.constant 0 : index
    %99 = vector.load %arg3[%c0_77, %c0_78] : memref<1x16xf32, #tpu.memory_space<vmem>>, vector<1x16xf32>
    %c0_79 = arith.constant 0 : index
    %c0_80 = arith.constant 0 : index
    %100 = vector.load %arg5[%c0_79, %c0_80] : memref<11x16xf32, #tpu.memory_space<vmem>>, vector<11x16xf32>
    %cst = arith.constant dense<0.000000e+00> : vector<16xf32>
    %101 = vector.multi_reduction <add>, %100, %cst [0] : vector<11x16xf32> to vector<16xf32>
    %102 = vector.shape_cast %101 : vector<16xf32> to vector<1x16xf32>
    %103 = arith.addf %99, %102 : vector<1x16xf32>
    %c0_81 = arith.constant 0 : index
    %c0_82 = arith.constant 0 : index
    %104 = vector.load %arg4[%c0_81, %c0_82] : memref<1x16xf32, #tpu.memory_space<vmem>>, vector<1x16xf32>
    tpu.vector_store %arg4[%c0_81, %c0_82], %103 {strides = array<i32>} : memref<1x16xf32, #tpu.memory_space<vmem>>, vector<1x16xf32>,
    return
  }
  func.func @transform_1(%arg0: i32, %arg1: memref<11xi32, #tpu.memory_space<smem>>) -> (i32, i32) {
    %c0_i32 = arith.constant 0 : i32
    %c0_i32_0 = arith.constant 0 : i32
    %c0_i32_1 = arith.constant 0 : i32
    return %c0_i32, %c0_i32_0 : i32, i32
  }
  func.func @transform_2(%arg0: i32, %arg1: memref<11xi32, #tpu.memory_space<smem>>) -> (i32, i32) {
    %c0_i32 = arith.constant 0 : i32
    %c0_i32_0 = arith.constant 0 : i32
    %c0_i32_1 = arith.constant 0 : i32
    return %c0_i32, %c0_i32_0 : i32, i32
  }
}

</mosaic_0001>

<llo_original>
// kernel: tpu_custom_call.1
$region0: #{tpu_custom_call.1}
  #allocation0 [shape = 'u32[]', space=smem, size = 0x4, offset = 0x4, fixed_abs, tag = 'smem constant byte address 0x4 - core index']
  #allocation1 [shape = 'u32[72,128]{1,0:T(1,128)}', space=vmem, size = 0x9000, scoped, tag = 'internal scratch']
  #allocation2 [shape = 'f32[11,16]{1,0:T(8,128)}', space=vmem, size = 0x2000, scoped, tag = 'scratch operand']
  #allocation3 [shape = 's32[11]{0}', space=sflag, size = 0x2c, scoped, tag = 'scratch operand']
  #allocation4 [shape = 's32[1]{0}', space=sflag, size = 0x4, scoped, tag = 'scoped memory for tpu_custom_call.1']
  #allocation5 [shape = 'u8[512]{0}', space=smem, size = 0x200, scoped, tag = 'prefetched SMEM operand 0']
  #allocation8 [shape = 's32[]', space=sflag, size = 0x4, offset = 0, fixed_abs, tag = 'sflag constant byte address 0x0 - dummy sync flag']
  #allocation9 [shape = 's32[]', space=sflag, size = 0x4, offset = 0, fixed_abs, tag = 'sflag constant byte address 0x0 - dummy sync flag']
  #allocation10 [shape = 's32[]', space=sflag, size = 0x4, offset = 0, fixed_abs, tag = 'sflag constant byte address 0x0 - dummy sync flag']
  #allocation11 [shape = 's32[]', space=sflag, size = 0x4, offset = 0, fixed_abs, tag = 'sflag constant byte address 0x0 - dummy sync flag']
  #allocation12 [shape = 's32[]', space=sflag, size = 0x4, offset = 0, fixed_abs, tag = 'sflag constant byte address 0x0 - dummy sync flag']
  #allocation13 [shape = 's32[]', space=sflag, size = 0x4, offset = 0, fixed_abs, tag = 'sflag constant byte address 0x0 - dummy sync flag']
  #allocation14 [shape = 's32[]', space=sflag, size = 0x4, offset = 0, fixed_abs, tag = 'sflag constant byte address 0x0 - dummy sync flag']
  #allocation15 [shape = 's32[]', space=sflag, size = 0x4, offset = 0, fixed_abs, tag = 'sflag constant byte address 0x0 - dummy sync flag']
  #allocation16 [shape = 's32[]', space=sflag, size = 0x4, offset = 0, fixed_abs, tag = 'sflag constant byte address 0x0 - dummy sync flag']
  #allocation17 [shape = 's32[]', space=sflag, size = 0x4, offset = 0, fixed_abs, tag = 'sflag constant byte address 0x0 - dummy sync flag']
  #allocation18 [shape = 's32[]', space=sflag, size = 0x4, offset = 0, fixed_abs, tag = 'sflag constant byte address 0x0 - dummy sync flag']
  %s0 = inlined_call_operand.vmem [shape: s32[11], index: 0, kind: input, shape index: {}]
  %s1 = inlined_call_operand.vmem [shape: f32[1000,16], index: 1, kind: input, shape index: {}]
  %s2 = inlined_call_operand.vmem [shape: f32[1,16], index: 2, kind: input, shape index: {}]
  %s3 = inlined_call_operand.hbm [shape: f32[1,16], index: 3, kind: output, shape index: {}]
  %s4 = sld [smem:[#allocation0]]
  $region344: #{tpu_custom_call.1} parent=0
    _
  %s6 = ssub.s32 1, %s4
  %s7 = scalar_select 0, %s6, %s4
  %s9 = sshll.u32 %s0, 4
  %s10 = int_to_ptr.vmem [resolvable:$true] %s9
  %12 = dma.vmem_to_smem %s10, 16, [#allocation5], [#allocation4]
  %14 = dma.done [#allocation4], 16
  %15 = sfence
  $region1: #{tpu_custom_call.1} parent=0
    #allocation6 [shape = 'u8[512]{0}', space=vmem, size = 0x400, scoped, tag = 'output window, operand 0, single buffered']
    #allocation7 [shape = 's32[1]{0}', space=sflag, size = 0x4, scoped, tag = 'scoped memory for tpu_custom_call.1']
    %16 = vsyncpa [#allocation7], 0
    // Predicated region
    $region2: #{tpu_custom_call.1} parent=1 // pred_check
      _
    $region3: #{tpu_custom_call.1} parent=1 // pred_check_branch
      %18 = sbr.rel (0) target = $region5
    $region4: #{tpu_custom_call.1} parent=1 // pred_region
      _
    $region5: #{tpu_custom_call.1} parent=1 // pred_fallthru
      _
    %s19 = sld [smem:[#allocation5]]
    %s20 = scalar_lea.vmem %s1, %s19
    // Predicated region
    $region6: #{tpu_custom_call.1} parent=1 // pred_check
      _
    $region7: #{tpu_custom_call.1} parent=1 // pred_check_branch
      %22 = sbr.rel target = $region9
    $region8: #{tpu_custom_call.1} parent=1 // pred_region
      // Predicated region
      $region21: #{tpu_custom_call.1} parent=8 // pred_check
        _
      $region22: #{tpu_custom_call.1} parent=8 // pred_check_branch
        %38 = sbr.rel (0) target = $region24
      $region23: #{tpu_custom_call.1} parent=8 // pred_region
        %s40 = ssub.s32 2, 1
        loop: start=0, step=1, limit=1
        $region25: #{tpu_custom_call.1} parent=23 // loop_pre_header
          _
        $region26: #{tpu_custom_call.1} parent=23 // loop_header
          %s42 = sphi 0, %s46
          %p43 = scmp.ge.s32.totalorder %s42, 1
          %s47 = sphi %s20, %s20
          %s48 = sphi [#allocation2], [#allocation2]
        $region27: #{tpu_custom_call.1} parent=23 // loop_header_branch
          %45 = sbr.rel (%p43) target = $region31
        $region28: #{tpu_custom_call.1} parent=23 // loop_body
          %v49 = vld [vmem:[%s47] sm:%s40]
          %50 = vst [vmem:[%s48] sm:%s40] %v49
        $region29: #{tpu_custom_call.1} parent=23 // loop_footer
          %s46 = sadd.s32 1, %s42
        $region30: #{tpu_custom_call.1} parent=23 // loop_footer_branch
          %41 = sbr.rel target = $region26
        $region31: #{tpu_custom_call.1} parent=23 // loop_exit
          _
      $region24: #{tpu_custom_call.1} parent=8 // pred_fallthru
        _
    $region9: #{tpu_custom_call.1} parent=1 // pred_fallthru
      _
    // Predicated region
    $region10: #{tpu_custom_call.1} parent=1 // pred_check
      _
    $region11: #{tpu_custom_call.1} parent=1 // pred_check_branch
      %24 = sbr.rel (0) target = $region13
    $region12: #{tpu_custom_call.1} parent=1 // pred_region
      %s26 = ssub.s32 2, 1
      loop: start=0, step=1, limit=1
      $region14: #{tpu_custom_call.1} parent=12 // loop_pre_header
        _
      $region15: #{tpu_custom_call.1} parent=12 // loop_header
        %s28 = sphi 0, %s32
        %p29 = scmp.ge.s32.totalorder %s28, 1
        %s33 = sphi %s20, %s20
        %s34 = sphi [#allocation2], [#allocation2]
      $region16: #{tpu_custom_call.1} parent=12 // loop_header_branch
        %31 = sbr.rel (%p29) target = $region20
      $region17: #{tpu_custom_call.1} parent=12 // loop_body
        %v35 = vld [vmem:[%s33] sm:%s26]
        %36 = vst [vmem:[%s34] sm:%s26] %v35
      $region18: #{tpu_custom_call.1} parent=12 // loop_footer
        %s32 = sadd.s32 1, %s28
      $region19: #{tpu_custom_call.1} parent=12 // loop_footer_branch
        %27 = sbr.rel target = $region15
      $region20: #{tpu_custom_call.1} parent=12 // loop_exit
        _
    $region13: #{tpu_custom_call.1} parent=1 // pred_fallthru
      _
    // Predicated region
    $region32: #{tpu_custom_call.1} parent=1 // pred_check
      _
    $region33: #{tpu_custom_call.1} parent=1 // pred_check_branch
      %53 = sbr.rel (0) target = $region35
    $region34: #{tpu_custom_call.1} parent=1 // pred_region
      %54 = vsyncadd [#allocation3], 16
    $region35: #{tpu_custom_call.1} parent=1 // pred_fallthru
      _
    %s55 = sld [smem:[#allocation5 + $0x1]]
    %s56 = scalar_lea.vmem %s1, %s55
    %s57 = scalar_lea.vmem [#allocation2], 1
    %s58 = scalar_lea.sflag [#allocation3], 1
    // Predicated region
    $region36: #{tpu_custom_call.1} parent=1 // pred_check
      _
    $region37: #{tpu_custom_call.1} parent=1 // pred_check_branch
      %60 = sbr.rel target = $region39
    $region38: #{tpu_custom_call.1} parent=1 // pred_region
      // Predicated region
      $region51: #{tpu_custom_call.1} parent=38 // pred_check
        _
      $region52: #{tpu_custom_call.1} parent=38 // pred_check_branch
        %76 = sbr.rel (0) target = $region54
      $region53: #{tpu_custom_call.1} parent=38 // pred_region
        %s78 = ssub.s32 2, 1
        loop: start=0, step=1, limit=1
        $region55: #{tpu_custom_call.1} parent=53 // loop_pre_header
          _
        $region56: #{tpu_custom_call.1} parent=53 // loop_header
          %s80 = sphi 0, %s84
          %p81 = scmp.ge.s32.totalorder %s80, 1
          %s85 = sphi %s56, %s56
          %s86 = sphi %s57, %s57
        $region57: #{tpu_custom_call.1} parent=53 // loop_header_branch
          %83 = sbr.rel (%p81) target = $region61
        $region58: #{tpu_custom_call.1} parent=53 // loop_body
          %v87 = vld [vmem:[%s85] sm:%s78]
          %88 = vst [vmem:[%s86] sm:%s78] %v87
        $region59: #{tpu_custom_call.1} parent=53 // loop_footer
          %s84 = sadd.s32 1, %s80
        $region60: #{tpu_custom_call.1} parent=53 // loop_footer_branch
          %79 = sbr.rel target = $region56
        $region61: #{tpu_custom_call.1} parent=53 // loop_exit
          _
      $region54: #{tpu_custom_call.1} parent=38 // pred_fallthru
        _
    $region39: #{tpu_custom_call.1} parent=1 // pred_fallthru
      _
    // Predicated region
    $region40: #{tpu_custom_call.1} parent=1 // pred_check
      _
    $region41: #{tpu_custom_call.1} parent=1 // pred_check_branch
      %62 = sbr.rel (0) target = $region43
    $region42: #{tpu_custom_call.1} parent=1 // pred_region
      %s64 = ssub.s32 2, 1
      loop: start=0, step=1, limit=1
      $region44: #{tpu_custom_call.1} parent=42 // loop_pre_header
        _
      $region45: #{tpu_custom_call.1} parent=42 // loop_header
        %s66 = sphi 0, %s70
        %p67 = scmp.ge.s32.totalorder %s66, 1
        %s71 = sphi %s56, %s56
        %s72 = sphi %s57, %s57
      $region46: #{tpu_custom_call.1} parent=42 // loop_header_branch
        %69 = sbr.rel (%p67) target = $region50
      $region47: #{tpu_custom_call.1} parent=42 // loop_body
        %v73 = vld [vmem:[%s71] sm:%s64]
        %74 = vst [vmem:[%s72] sm:%s64] %v73
      $region48: #{tpu_custom_call.1} parent=42 // loop_footer
        %s70 = sadd.s32 1, %s66
      $region49: #{tpu_custom_call.1} parent=42 // loop_footer_branch
        %65 = sbr.rel target = $region45
      $region50: #{tpu_custom_call.1} parent=42 // loop_exit
        _
    $region43: #{tpu_custom_call.1} parent=1 // pred_fallthru
      _
    // Predicated region
    $region62: #{tpu_custom_call.1} parent=1 // pred_check
      _
    $region63: #{tpu_custom_call.1} parent=1 // pred_check_branch
      %91 = sbr.rel (0) target = $region65
    $region64: #{tpu_custom_call.1} parent=1 // pred_region
      %92 = vsyncadd %s58, 16
    $region65: #{tpu_custom_call.1} parent=1 // pred_fallthru
      _
    %s93 = sld [smem:[#allocation5 + $0x2]]
    %s94 = scalar_lea.vmem %s1, %s93
    %s95 = scalar_lea.vmem [#allocation2], 2
    %s96 = scalar_lea.sflag [#allocation3], 2
    // Predicated region
    $region66: #{tpu_custom_call.1} parent=1 // pred_check
      _
    $region67: #{tpu_custom_call.1} parent=1 // pred_check_branch
      %98 = sbr.rel target = $region69
    $region68: #{tpu_custom_call.1} parent=1 // pred_region
      // Predicated region
      $region81: #{tpu_custom_call.1} parent=68 // pred_check
        _
      $region82: #{tpu_custom_call.1} parent=68 // pred_check_branch
        %114 = sbr.rel (0) target = $region84
      $region83: #{tpu_custom_call.1} parent=68 // pred_region
        %s116 = ssub.s32 2, 1
        loop: start=0, step=1, limit=1
        $region85: #{tpu_custom_call.1} parent=83 // loop_pre_header
          _
        $region86: #{tpu_custom_call.1} parent=83 // loop_header
          %s118 = sphi 0, %s122
          %p119 = scmp.ge.s32.totalorder %s118, 1
          %s123 = sphi %s94, %s94
          %s124 = sphi %s95, %s95
        $region87: #{tpu_custom_call.1} parent=83 // loop_header_branch
          %121 = sbr.rel (%p119) target = $region91
        $region88: #{tpu_custom_call.1} parent=83 // loop_body
          %v125 = vld [vmem:[%s123] sm:%s116]
          %126 = vst [vmem:[%s124] sm:%s116] %v125
        $region89: #{tpu_custom_call.1} parent=83 // loop_footer
          %s122 = sadd.s32 1, %s118
        $region90: #{tpu_custom_call.1} parent=83 // loop_footer_branch
          %117 = sbr.rel target = $region86
        $region91: #{tpu_custom_call.1} parent=83 // loop_exit
          _
      $region84: #{tpu_custom_call.1} parent=68 // pred_fallthru
        _
    $region69: #{tpu_custom_call.1} parent=1 // pred_fallthru
      _
    // Predicated region
    $region70: #{tpu_custom_call.1} parent=1 // pred_check
      _
    $region71: #{tpu_custom_call.1} parent=1 // pred_check_branch
      %100 = sbr.rel (0) target = $region73
    $region72: #{tpu_custom_call.1} parent=1 // pred_region
      %s102 = ssub.s32 2, 1
      loop: start=0, step=1, limit=1
      $region74: #{tpu_custom_call.1} parent=72 // loop_pre_header
        _
      $region75: #{tpu_custom_call.1} parent=72 // loop_header
        %s104 = sphi 0, %s108
        %p105 = scmp.ge.s32.totalorder %s104, 1
        %s109 = sphi %s94, %s94
        %s110 = sphi %s95, %s95
      $region76: #{tpu_custom_call.1} parent=72 // loop_header_branch
        %107 = sbr.rel (%p105) target = $region80
      $region77: #{tpu_custom_call.1} parent=72 // loop_body
        %v111 = vld [vmem:[%s109] sm:%s102]
        %112 = vst [vmem:[%s110] sm:%s102] %v111
      $region78: #{tpu_custom_call.1} parent=72 // loop_footer
        %s108 = sadd.s32 1, %s104
      $region79: #{tpu_custom_call.1} parent=72 // loop_footer_branch
        %103 = sbr.rel target = $region75
      $region80: #{tpu_custom_call.1} parent=72 // loop_exit
        _
    $region73: #{tpu_custom_call.1} parent=1 // pred_fallthru
      _
    // Predicated region
    $region92: #{tpu_custom_call.1} parent=1 // pred_check
      _
    $region93: #{tpu_custom_call.1} parent=1 // pred_check_branch
      %129 = sbr.rel (0) target = $region95
    $region94: #{tpu_custom_call.1} parent=1 // pred_region
      %130 = vsyncadd %s96, 16
    $region95: #{tpu_custom_call.1} parent=1 // pred_fallthru
      _
    %s131 = sld [smem:[#allocation5 + $0x3]]
    %s132 = scalar_lea.vmem %s1, %s131
    %s133 = scalar_lea.vmem [#allocation2], 3
    %s134 = scalar_lea.sflag [#allocation3], 3
    // Predicated region
    $region96: #{tpu_custom_call.1} parent=1 // pred_check
      _
    $region97: #{tpu_custom_call.1} parent=1 // pred_check_branch
      %136 = sbr.rel target = $region99
    $region98: #{tpu_custom_call.1} parent=1 // pred_region
      // Predicated region
      $region111: #{tpu_custom_call.1} parent=98 // pred_check
        _
      $region112: #{tpu_custom_call.1} parent=98 // pred_check_branch
        %152 = sbr.rel (0) target = $region114
      $region113: #{tpu_custom_call.1} parent=98 // pred_region
        %s154 = ssub.s32 2, 1
        loop: start=0, step=1, limit=1
        $region115: #{tpu_custom_call.1} parent=113 // loop_pre_header
          _
        $region116: #{tpu_custom_call.1} parent=113 // loop_header
          %s156 = sphi 0, %s160
          %p157 = scmp.ge.s32.totalorder %s156, 1
          %s161 = sphi %s132, %s132
          %s162 = sphi %s133, %s133
        $region117: #{tpu_custom_call.1} parent=113 // loop_header_branch
          %159 = sbr.rel (%p157) target = $region121
        $region118: #{tpu_custom_call.1} parent=113 // loop_body
          %v163 = vld [vmem:[%s161] sm:%s154]
          %164 = vst [vmem:[%s162] sm:%s154] %v163
        $region119: #{tpu_custom_call.1} parent=113 // loop_footer
          %s160 = sadd.s32 1, %s156
        $region120: #{tpu_custom_call.1} parent=113 // loop_footer_branch
          %155 = sbr.rel target = $region116
        $region121: #{tpu_custom_call.1} parent=113 // loop_exit
          _
      $region114: #{tpu_custom_call.1} parent=98 // pred_fallthru
        _
    $region99: #{tpu_custom_call.1} parent=1 // pred_fallthru
      _
    // Predicated region
    $region100: #{tpu_custom_call.1} parent=1 // pred_check
      _
    $region101: #{tpu_custom_call.1} parent=1 // pred_check_branch
      %138 = sbr.rel (0) target = $region103
    $region102: #{tpu_custom_call.1} parent=1 // pred_region
      %s140 = ssub.s32 2, 1
      loop: start=0, step=1, limit=1
      $region104: #{tpu_custom_call.1} parent=102 // loop_pre_header
        _
      $region105: #{tpu_custom_call.1} parent=102 // loop_header
        %s142 = sphi 0, %s146
        %p143 = scmp.ge.s32.totalorder %s142, 1
        %s147 = sphi %s132, %s132
        %s148 = sphi %s133, %s133
      $region106: #{tpu_custom_call.1} parent=102 // loop_header_branch
        %145 = sbr.rel (%p143) target = $region110
      $region107: #{tpu_custom_call.1} parent=102 // loop_body
        %v149 = vld [vmem:[%s147] sm:%s140]
        %150 = vst [vmem:[%s148] sm:%s140] %v149
      $region108: #{tpu_custom_call.1} parent=102 // loop_footer
        %s146 = sadd.s32 1, %s142
      $region109: #{tpu_custom_call.1} parent=102 // loop_footer_branch
        %141 = sbr.rel target = $region105
      $region110: #{tpu_custom_call.1} parent=102 // loop_exit
        _
    $region103: #{tpu_custom_call.1} parent=1 // pred_fallthru
      _
    // Predicated region
    $region122: #{tpu_custom_call.1} parent=1 // pred_check
      _
    $region123: #{tpu_custom_call.1} parent=1 // pred_check_branch
      %167 = sbr.rel (0) target = $region125
    $region124: #{tpu_custom_call.1} parent=1 // pred_region
      %168 = vsyncadd %s134, 16
    $region125: #{tpu_custom_call.1} parent=1 // pred_fallthru
      _
    %s169 = sld [smem:[#allocation5 + $0x4]]
    %s170 = scalar_lea.vmem %s1, %s169
    %s171 = scalar_lea.vmem [#allocation2], 4
    %s172 = scalar_lea.sflag [#allocation3], 4
    // Predicated region
    $region126: #{tpu_custom_call.1} parent=1 // pred_check
      _
    $region127: #{tpu_custom_call.1} parent=1 // pred_check_branch
      %174 = sbr.rel target = $region129
    $region128: #{tpu_custom_call.1} parent=1 // pred_region
      // Predicated region
      $region141: #{tpu_custom_call.1} parent=128 // pred_check
        _
      $region142: #{tpu_custom_call.1} parent=128 // pred_check_branch
        %190 = sbr.rel (0) target = $region144
      $region143: #{tpu_custom_call.1} parent=128 // pred_region
        %s192 = ssub.s32 2, 1
        loop: start=0, step=1, limit=1
        $region145: #{tpu_custom_call.1} parent=143 // loop_pre_header
          _
        $region146: #{tpu_custom_call.1} parent=143 // loop_header
          %s194 = sphi 0, %s198
          %p195 = scmp.ge.s32.totalorder %s194, 1
          %s199 = sphi %s170, %s170
          %s200 = sphi %s171, %s171
        $region147: #{tpu_custom_call.1} parent=143 // loop_header_branch
          %197 = sbr.rel (%p195) target = $region151
        $region148: #{tpu_custom_call.1} parent=143 // loop_body
          %v201 = vld [vmem:[%s199] sm:%s192]
          %202 = vst [vmem:[%s200] sm:%s192] %v201
        $region149: #{tpu_custom_call.1} parent=143 // loop_footer
          %s198 = sadd.s32 1, %s194
        $region150: #{tpu_custom_call.1} parent=143 // loop_footer_branch
          %193 = sbr.rel target = $region146
        $region151: #{tpu_custom_call.1} parent=143 // loop_exit
          _
      $region144: #{tpu_custom_call.1} parent=128 // pred_fallthru
        _
    $region129: #{tpu_custom_call.1} parent=1 // pred_fallthru
      _
    // Predicated region
    $region130: #{tpu_custom_call.1} parent=1 // pred_check
      _
    $region131: #{tpu_custom_call.1} parent=1 // pred_check_branch
      %176 = sbr.rel (0) target = $region133
    $region132: #{tpu_custom_call.1} parent=1 // pred_region
      %s178 = ssub.s32 2, 1
      loop: start=0, step=1, limit=1
      $region134: #{tpu_custom_call.1} parent=132 // loop_pre_header
        _
      $region135: #{tpu_custom_call.1} parent=132 // loop_header
        %s180 = sphi 0, %s184
        %p181 = scmp.ge.s32.totalorder %s180, 1
        %s185 = sphi %s170, %s170
        %s186 = sphi %s171, %s171
      $region136: #{tpu_custom_call.1} parent=132 // loop_header_branch
        %183 = sbr.rel (%p181) target = $region140
      $region137: #{tpu_custom_call.1} parent=132 // loop_body
        %v187 = vld [vmem:[%s185] sm:%s178]
        %188 = vst [vmem:[%s186] sm:%s178] %v187
      $region138: #{tpu_custom_call.1} parent=132 // loop_footer
        %s184 = sadd.s32 1, %s180
      $region139: #{tpu_custom_call.1} parent=132 // loop_footer_branch
        %179 = sbr.rel target = $region135
      $region140: #{tpu_custom_call.1} parent=132 // loop_exit
        _
    $region133: #{tpu_custom_call.1} parent=1 // pred_fallthru
      _
    // Predicated region
    $region152: #{tpu_custom_call.1} parent=1 // pred_check
      _
    $region153: #{tpu_custom_call.1} parent=1 // pred_check_branch
      %205 = sbr.rel (0) target = $region155
    $region154: #{tpu_custom_call.1} parent=1 // pred_region
      %206 = vsyncadd %s172, 16
    $region155: #{tpu_custom_call.1} parent=1 // pred_fallthru
      _
    %s207 = sld [smem:[#allocation5 + $0x5]]
    %s208 = scalar_lea.vmem %s1, %s207
    %s209 = scalar_lea.vmem [#allocation2], 5
    %s210 = scalar_lea.sflag [#allocation3], 5
    // Predicated region
    $region156: #{tpu_custom_call.1} parent=1 // pred_check
      _
    $region157: #{tpu_custom_call.1} parent=1 // pred_check_branch
      %212 = sbr.rel target = $region159
    $region158: #{tpu_custom_call.1} parent=1 // pred_region
      // Predicated region
      $region171: #{tpu_custom_call.1} parent=158 // pred_check
        _
      $region172: #{tpu_custom_call.1} parent=158 // pred_check_branch
        %228 = sbr.rel (0) target = $region174
      $region173: #{tpu_custom_call.1} parent=158 // pred_region
        %s230 = ssub.s32 2, 1
        loop: start=0, step=1, limit=1
        $region175: #{tpu_custom_call.1} parent=173 // loop_pre_header
          _
        $region176: #{tpu_custom_call.1} parent=173 // loop_header
          %s232 = sphi 0, %s236
          %p233 = scmp.ge.s32.totalorder %s232, 1
          %s237 = sphi %s208, %s208
          %s238 = sphi %s209, %s209
        $region177: #{tpu_custom_call.1} parent=173 // loop_header_branch
          %235 = sbr.rel (%p233) target = $region181
        $region178: #{tpu_custom_call.1} parent=173 // loop_body
          %v239 = vld [vmem:[%s237] sm:%s230]
          %240 = vst [vmem:[%s238] sm:%s230] %v239
        $region179: #{tpu_custom_call.1} parent=173 // loop_footer
          %s236 = sadd.s32 1, %s232
        $region180: #{tpu_custom_call.1} parent=173 // loop_footer_branch
          %231 = sbr.rel target = $region176
        $region181: #{tpu_custom_call.1} parent=173 // loop_exit
          _
      $region174: #{tpu_custom_call.1} parent=158 // pred_fallthru
        _
    $region159: #{tpu_custom_call.1} parent=1 // pred_fallthru
      _
    // Predicated region
    $region160: #{tpu_custom_call.1} parent=1 // pred_check
      _
    $region161: #{tpu_custom_call.1} parent=1 // pred_check_branch
      %214 = sbr.rel (0) target = $region163
    $region162: #{tpu_custom_call.1} parent=1 // pred_region
      %s216 = ssub.s32 2, 1
      loop: start=0, step=1, limit=1
      $region164: #{tpu_custom_call.1} parent=162 // loop_pre_header
        _
      $region165: #{tpu_custom_call.1} parent=162 // loop_header
        %s218 = sphi 0, %s222
        %p219 = scmp.ge.s32.totalorder %s218, 1
        %s223 = sphi %s208, %s208
        %s224 = sphi %s209, %s209
      $region166: #{tpu_custom_call.1} parent=162 // loop_header_branch
        %221 = sbr.rel (%p219) target = $region170
      $region167: #{tpu_custom_call.1} parent=162 // loop_body
        %v225 = vld [vmem:[%s223] sm:%s216]
        %226 = vst [vmem:[%s224] sm:%s216] %v225
      $region168: #{tpu_custom_call.1} parent=162 // loop_footer
        %s222 = sadd.s32 1, %s218
      $region169: #{tpu_custom_call.1} parent=162 // loop_footer_branch
        %217 = sbr.rel target = $region165
      $region170: #{tpu_custom_call.1} parent=162 // loop_exit
        _
    $region163: #{tpu_custom_call.1} parent=1 // pred_fallthru
      _
    // Predicated region
    $region182: #{tpu_custom_call.1} parent=1 // pred_check
      _
    $region183: #{tpu_custom_call.1} parent=1 // pred_check_branch
      %243 = sbr.rel (0) target = $region185
    $region184: #{tpu_custom_call.1} parent=1 // pred_region
      %244 = vsyncadd %s210, 16
    $region185: #{tpu_custom_call.1} parent=1 // pred_fallthru
      _
    %s245 = sld [smem:[#allocation5 + $0x6]]
    %s246 = scalar_lea.vmem %s1, %s245
    %s247 = scalar_lea.vmem [#allocation2], 6
    %s248 = scalar_lea.sflag [#allocation3], 6
    // Predicated region
    $region186: #{tpu_custom_call.1} parent=1 // pred_check
      _
    $region187: #{tpu_custom_call.1} parent=1 // pred_check_branch
      %250 = sbr.rel target = $region189
    $region188: #{tpu_custom_call.1} parent=1 // pred_region
      // Predicated region
      $region201: #{tpu_custom_call.1} parent=188 // pred_check
        _
      $region202: #{tpu_custom_call.1} parent=188 // pred_check_branch
        %266 = sbr.rel (0) target = $region204
      $region203: #{tpu_custom_call.1} parent=188 // pred_region
        %s268 = ssub.s32 2, 1
        loop: start=0, step=1, limit=1
        $region205: #{tpu_custom_call.1} parent=203 // loop_pre_header
          _
        $region206: #{tpu_custom_call.1} parent=203 // loop_header
          %s270 = sphi 0, %s274
          %p271 = scmp.ge.s32.totalorder %s270, 1
          %s275 = sphi %s246, %s246
          %s276 = sphi %s247, %s247
        $region207: #{tpu_custom_call.1} parent=203 // loop_header_branch
          %273 = sbr.rel (%p271) target = $region211
        $region208: #{tpu_custom_call.1} parent=203 // loop_body
          %v277 = vld [vmem:[%s275] sm:%s268]
          %278 = vst [vmem:[%s276] sm:%s268] %v277
        $region209: #{tpu_custom_call.1} parent=203 // loop_footer
          %s274 = sadd.s32 1, %s270
        $region210: #{tpu_custom_call.1} parent=203 // loop_footer_branch
          %269 = sbr.rel target = $region206
        $region211: #{tpu_custom_call.1} parent=203 // loop_exit
          _
      $region204: #{tpu_custom_call.1} parent=188 // pred_fallthru
        _
    $region189: #{tpu_custom_call.1} parent=1 // pred_fallthru
      _
    // Predicated region
    $region190: #{tpu_custom_call.1} parent=1 // pred_check
      _
    $region191: #{tpu_custom_call.1} parent=1 // pred_check_branch
      %252 = sbr.rel (0) target = $region193
    $region192: #{tpu_custom_call.1} parent=1 // pred_region
      %s254 = ssub.s32 2, 1
      loop: start=0, step=1, limit=1
      $region194: #{tpu_custom_call.1} parent=192 // loop_pre_header
        _
      $region195: #{tpu_custom_call.1} parent=192 // loop_header
        %s256 = sphi 0, %s260
        %p257 = scmp.ge.s32.totalorder %s256, 1
        %s261 = sphi %s246, %s246
        %s262 = sphi %s247, %s247
      $region196: #{tpu_custom_call.1} parent=192 // loop_header_branch
        %259 = sbr.rel (%p257) target = $region200
      $region197: #{tpu_custom_call.1} parent=192 // loop_body
        %v263 = vld [vmem:[%s261] sm:%s254]
        %264 = vst [vmem:[%s262] sm:%s254] %v263
      $region198: #{tpu_custom_call.1} parent=192 // loop_footer
        %s260 = sadd.s32 1, %s256
      $region199: #{tpu_custom_call.1} parent=192 // loop_footer_branch
        %255 = sbr.rel target = $region195
      $region200: #{tpu_custom_call.1} parent=192 // loop_exit
        _
    $region193: #{tpu_custom_call.1} parent=1 // pred_fallthru
      _
    // Predicated region
    $region212: #{tpu_custom_call.1} parent=1 // pred_check
      _
    $region213: #{tpu_custom_call.1} parent=1 // pred_check_branch
      %281 = sbr.rel (0) target = $region215
    $region214: #{tpu_custom_call.1} parent=1 // pred_region
      %282 = vsyncadd %s248, 16
    $region215: #{tpu_custom_call.1} parent=1 // pred_fallthru
      _
    %s283 = sld [smem:[#allocation5 + $0x7]]
    %s284 = scalar_lea.vmem %s1, %s283
    %s285 = scalar_lea.vmem [#allocation2], 7
    %s286 = scalar_lea.sflag [#allocation3], 7
    // Predicated region
    $region216: #{tpu_custom_call.1} parent=1 // pred_check
      _
    $region217: #{tpu_custom_call.1} parent=1 // pred_check_branch
      %288 = sbr.rel target = $region219
    $region218: #{tpu_custom_call.1} parent=1 // pred_region
      // Predicated region
      $region231: #{tpu_custom_call.1} parent=218 // pred_check
        _
      $region232: #{tpu_custom_call.1} parent=218 // pred_check_branch
        %304 = sbr.rel (0) target = $region234
      $region233: #{tpu_custom_call.1} parent=218 // pred_region
        %s306 = ssub.s32 2, 1
        loop: start=0, step=1, limit=1
        $region235: #{tpu_custom_call.1} parent=233 // loop_pre_header
          _
        $region236: #{tpu_custom_call.1} parent=233 // loop_header
          %s308 = sphi 0, %s312
          %p309 = scmp.ge.s32.totalorder %s308, 1
          %s313 = sphi %s284, %s284
          %s314 = sphi %s285, %s285
        $region237: #{tpu_custom_call.1} parent=233 // loop_header_branch
          %311 = sbr.rel (%p309) target = $region241
        $region238: #{tpu_custom_call.1} parent=233 // loop_body
          %v315 = vld [vmem:[%s313] sm:%s306]
          %316 = vst [vmem:[%s314] sm:%s306] %v315
        $region239: #{tpu_custom_call.1} parent=233 // loop_footer
          %s312 = sadd.s32 1, %s308
        $region240: #{tpu_custom_call.1} parent=233 // loop_footer_branch
          %307 = sbr.rel target = $region236
        $region241: #{tpu_custom_call.1} parent=233 // loop_exit
          _
      $region234: #{tpu_custom_call.1} parent=218 // pred_fallthru
        _
    $region219: #{tpu_custom_call.1} parent=1 // pred_fallthru
      _
    // Predicated region
    $region220: #{tpu_custom_call.1} parent=1 // pred_check
      _
    $region221: #{tpu_custom_call.1} parent=1 // pred_check_branch
      %290 = sbr.rel (0) target = $region223
    $region222: #{tpu_custom_call.1} parent=1 // pred_region
      %s292 = ssub.s32 2, 1
      loop: start=0, step=1, limit=1
      $region224: #{tpu_custom_call.1} parent=222 // loop_pre_header
        _
      $region225: #{tpu_custom_call.1} parent=222 // loop_header
        %s294 = sphi 0, %s298
        %p295 = scmp.ge.s32.totalorder %s294, 1
        %s299 = sphi %s284, %s284
        %s300 = sphi %s285, %s285
      $region226: #{tpu_custom_call.1} parent=222 // loop_header_branch
        %297 = sbr.rel (%p295) target = $region230
      $region227: #{tpu_custom_call.1} parent=222 // loop_body
        %v301 = vld [vmem:[%s299] sm:%s292]
        %302 = vst [vmem:[%s300] sm:%s292] %v301
      $region228: #{tpu_custom_call.1} parent=222 // loop_footer
        %s298 = sadd.s32 1, %s294
      $region229: #{tpu_custom_call.1} parent=222 // loop_footer_branch
        %293 = sbr.rel target = $region225
      $region230: #{tpu_custom_call.1} parent=222 // loop_exit
        _
    $region223: #{tpu_custom_call.1} parent=1 // pred_fallthru
      _
    // Predicated region
    $region242: #{tpu_custom_call.1} parent=1 // pred_check
      _
    $region243: #{tpu_custom_call.1} parent=1 // pred_check_branch
      %319 = sbr.rel (0) target = $region245
    $region244: #{tpu_custom_call.1} parent=1 // pred_region
      %320 = vsyncadd %s286, 16
    $region245: #{tpu_custom_call.1} parent=1 // pred_fallthru
      _
    %s321 = sld [smem:[#allocation5 + $0x8]]
    %s322 = scalar_lea.vmem %s1, %s321
    %s323 = scalar_lea.vmem [#allocation2], 8
    %s324 = scalar_lea.sflag [#allocation3], 8
    // Predicated region
    $region246: #{tpu_custom_call.1} parent=1 // pred_check
      _
    $region247: #{tpu_custom_call.1} parent=1 // pred_check_branch
      %326 = sbr.rel target = $region249
    $region248: #{tpu_custom_call.1} parent=1 // pred_region
      // Predicated region
      $region261: #{tpu_custom_call.1} parent=248 // pred_check
        _
      $region262: #{tpu_custom_call.1} parent=248 // pred_check_branch
        %342 = sbr.rel (0) target = $region264
      $region263: #{tpu_custom_call.1} parent=248 // pred_region
        %s344 = ssub.s32 2, 1
        loop: start=0, step=1, limit=1
        $region265: #{tpu_custom_call.1} parent=263 // loop_pre_header
          _
        $region266: #{tpu_custom_call.1} parent=263 // loop_header
          %s346 = sphi 0, %s350
          %p347 = scmp.ge.s32.totalorder %s346, 1
          %s351 = sphi %s322, %s322
          %s352 = sphi %s323, %s323
        $region267: #{tpu_custom_call.1} parent=263 // loop_header_branch
          %349 = sbr.rel (%p347) target = $region271
        $region268: #{tpu_custom_call.1} parent=263 // loop_body
          %v353 = vld [vmem:[%s351] sm:%s344]
          %354 = vst [vmem:[%s352] sm:%s344] %v353
        $region269: #{tpu_custom_call.1} parent=263 // loop_footer
          %s350 = sadd.s32 1, %s346
        $region270: #{tpu_custom_call.1} parent=263 // loop_footer_branch
          %345 = sbr.rel target = $region266
        $region271: #{tpu_custom_call.1} parent=263 // loop_exit
          _
      $region264: #{tpu_custom_call.1} parent=248 // pred_fallthru
        _
    $region249: #{tpu_custom_call.1} parent=1 // pred_fallthru
      _
    // Predicated region
    $region250: #{tpu_custom_call.1} parent=1 // pred_check
      _
    $region251: #{tpu_custom_call.1} parent=1 // pred_check_branch
      %328 = sbr.rel (0) target = $region253
    $region252: #{tpu_custom_call.1} parent=1 // pred_region
      %s330 = ssub.s32 2, 1
      loop: start=0, step=1, limit=1
      $region254: #{tpu_custom_call.1} parent=252 // loop_pre_header
        _
      $region255: #{tpu_custom_call.1} parent=252 // loop_header
        %s332 = sphi 0, %s336
        %p333 = scmp.ge.s32.totalorder %s332, 1
        %s337 = sphi %s322, %s322
        %s338 = sphi %s323, %s323
      $region256: #{tpu_custom_call.1} parent=252 // loop_header_branch
        %335 = sbr.rel (%p333) target = $region260
      $region257: #{tpu_custom_call.1} parent=252 // loop_body
        %v339 = vld [vmem:[%s337] sm:%s330]
        %340 = vst [vmem:[%s338] sm:%s330] %v339
      $region258: #{tpu_custom_call.1} parent=252 // loop_footer
        %s336 = sadd.s32 1, %s332
      $region259: #{tpu_custom_call.1} parent=252 // loop_footer_branch
        %331 = sbr.rel target = $region255
      $region260: #{tpu_custom_call.1} parent=252 // loop_exit
        _
    $region253: #{tpu_custom_call.1} parent=1 // pred_fallthru
      _
    // Predicated region
    $region272: #{tpu_custom_call.1} parent=1 // pred_check
      _
    $region273: #{tpu_custom_call.1} parent=1 // pred_check_branch
      %357 = sbr.rel (0) target = $region275
    $region274: #{tpu_custom_call.1} parent=1 // pred_region
      %358 = vsyncadd %s324, 16
    $region275: #{tpu_custom_call.1} parent=1 // pred_fallthru
      _
    %s359 = sld [smem:[#allocation5 + $0x9]]
    %s360 = scalar_lea.vmem %s1, %s359
    %s361 = scalar_lea.vmem [#allocation2], 9
    %s362 = scalar_lea.sflag [#allocation3], 9
    // Predicated region
    $region276: #{tpu_custom_call.1} parent=1 // pred_check
      _
    $region277: #{tpu_custom_call.1} parent=1 // pred_check_branch
      %364 = sbr.rel target = $region279
    $region278: #{tpu_custom_call.1} parent=1 // pred_region
      // Predicated region
      $region291: #{tpu_custom_call.1} parent=278 // pred_check
        _
      $region292: #{tpu_custom_call.1} parent=278 // pred_check_branch
        %380 = sbr.rel (0) target = $region294
      $region293: #{tpu_custom_call.1} parent=278 // pred_region
        %s382 = ssub.s32 2, 1
        loop: start=0, step=1, limit=1
        $region295: #{tpu_custom_call.1} parent=293 // loop_pre_header
          _
        $region296: #{tpu_custom_call.1} parent=293 // loop_header
          %s384 = sphi 0, %s388
          %p385 = scmp.ge.s32.totalorder %s384, 1
          %s389 = sphi %s360, %s360
          %s390 = sphi %s361, %s361
        $region297: #{tpu_custom_call.1} parent=293 // loop_header_branch
          %387 = sbr.rel (%p385) target = $region301
        $region298: #{tpu_custom_call.1} parent=293 // loop_body
          %v391 = vld [vmem:[%s389] sm:%s382]
          %392 = vst [vmem:[%s390] sm:%s382] %v391
        $region299: #{tpu_custom_call.1} parent=293 // loop_footer
          %s388 = sadd.s32 1, %s384
        $region300: #{tpu_custom_call.1} parent=293 // loop_footer_branch
          %383 = sbr.rel target = $region296
        $region301: #{tpu_custom_call.1} parent=293 // loop_exit
          _
      $region294: #{tpu_custom_call.1} parent=278 // pred_fallthru
        _
    $region279: #{tpu_custom_call.1} parent=1 // pred_fallthru
      _
    // Predicated region
    $region280: #{tpu_custom_call.1} parent=1 // pred_check
      _
    $region281: #{tpu_custom_call.1} parent=1 // pred_check_branch
      %366 = sbr.rel (0) target = $region283
    $region282: #{tpu_custom_call.1} parent=1 // pred_region
      %s368 = ssub.s32 2, 1
      loop: start=0, step=1, limit=1
      $region284: #{tpu_custom_call.1} parent=282 // loop_pre_header
        _
      $region285: #{tpu_custom_call.1} parent=282 // loop_header
        %s370 = sphi 0, %s374
        %p371 = scmp.ge.s32.totalorder %s370, 1
        %s375 = sphi %s360, %s360
        %s376 = sphi %s361, %s361
      $region286: #{tpu_custom_call.1} parent=282 // loop_header_branch
        %373 = sbr.rel (%p371) target = $region290
      $region287: #{tpu_custom_call.1} parent=282 // loop_body
        %v377 = vld [vmem:[%s375] sm:%s368]
        %378 = vst [vmem:[%s376] sm:%s368] %v377
      $region288: #{tpu_custom_call.1} parent=282 // loop_footer
        %s374 = sadd.s32 1, %s370
      $region289: #{tpu_custom_call.1} parent=282 // loop_footer_branch
        %369 = sbr.rel target = $region285
      $region290: #{tpu_custom_call.1} parent=282 // loop_exit
        _
    $region283: #{tpu_custom_call.1} parent=1 // pred_fallthru
      _
    // Predicated region
    $region302: #{tpu_custom_call.1} parent=1 // pred_check
      _
    $region303: #{tpu_custom_call.1} parent=1 // pred_check_branch
      %395 = sbr.rel (0) target = $region305
    $region304: #{tpu_custom_call.1} parent=1 // pred_region
      %396 = vsyncadd %s362, 16
    $region305: #{tpu_custom_call.1} parent=1 // pred_fallthru
      _
    %s397 = sld [smem:[#allocation5 + $0xa]]
    %s398 = scalar_lea.vmem %s1, %s397
    %s399 = scalar_lea.vmem [#allocation2], 10
    %s400 = scalar_lea.sflag [#allocation3], 10
    // Predicated region
    $region306: #{tpu_custom_call.1} parent=1 // pred_check
      _
    $region307: #{tpu_custom_call.1} parent=1 // pred_check_branch
      %402 = sbr.rel target = $region309
    $region308: #{tpu_custom_call.1} parent=1 // pred_region
      // Predicated region
      $region321: #{tpu_custom_call.1} parent=308 // pred_check
        _
      $region322: #{tpu_custom_call.1} parent=308 // pred_check_branch
        %418 = sbr.rel (0) target = $region324
      $region323: #{tpu_custom_call.1} parent=308 // pred_region
        %s420 = ssub.s32 2, 1
        loop: start=0, step=1, limit=1
        $region325: #{tpu_custom_call.1} parent=323 // loop_pre_header
          _
        $region326: #{tpu_custom_call.1} parent=323 // loop_header
          %s422 = sphi 0, %s426
          %p423 = scmp.ge.s32.totalorder %s422, 1
          %s427 = sphi %s398, %s398
          %s428 = sphi %s399, %s399
        $region327: #{tpu_custom_call.1} parent=323 // loop_header_branch
          %425 = sbr.rel (%p423) target = $region331
        $region328: #{tpu_custom_call.1} parent=323 // loop_body
          %v429 = vld [vmem:[%s427] sm:%s420]
          %430 = vst [vmem:[%s428] sm:%s420] %v429
        $region329: #{tpu_custom_call.1} parent=323 // loop_footer
          %s426 = sadd.s32 1, %s422
        $region330: #{tpu_custom_call.1} parent=323 // loop_footer_branch
          %421 = sbr.rel target = $region326
        $region331: #{tpu_custom_call.1} parent=323 // loop_exit
          _
      $region324: #{tpu_custom_call.1} parent=308 // pred_fallthru
        _
    $region309: #{tpu_custom_call.1} parent=1 // pred_fallthru
      _
    // Predicated region
    $region310: #{tpu_custom_call.1} parent=1 // pred_check
      _
    $region311: #{tpu_custom_call.1} parent=1 // pred_check_branch
      %404 = sbr.rel (0) target = $region313
    $region312: #{tpu_custom_call.1} parent=1 // pred_region
      %s406 = ssub.s32 2, 1
      loop: start=0, step=1, limit=1
      $region314: #{tpu_custom_call.1} parent=312 // loop_pre_header
        _
      $region315: #{tpu_custom_call.1} parent=312 // loop_header
        %s408 = sphi 0, %s412
        %p409 = scmp.ge.s32.totalorder %s408, 1
        %s413 = sphi %s398, %s398
        %s414 = sphi %s399, %s399
      $region316: #{tpu_custom_call.1} parent=312 // loop_header_branch
        %411 = sbr.rel (%p409) target = $region320
      $region317: #{tpu_custom_call.1} parent=312 // loop_body
        %v415 = vld [vmem:[%s413] sm:%s406]
        %416 = vst [vmem:[%s414] sm:%s406] %v415
      $region318: #{tpu_custom_call.1} parent=312 // loop_footer
        %s412 = sadd.s32 1, %s408
      $region319: #{tpu_custom_call.1} parent=312 // loop_footer_branch
        %407 = sbr.rel target = $region315
      $region320: #{tpu_custom_call.1} parent=312 // loop_exit
        _
    $region313: #{tpu_custom_call.1} parent=1 // pred_fallthru
      _
    // Predicated region
    $region332: #{tpu_custom_call.1} parent=1 // pred_check
      _
    $region333: #{tpu_custom_call.1} parent=1 // pred_check_branch
      %433 = sbr.rel (0) target = $region335
    $region334: #{tpu_custom_call.1} parent=1 // pred_region
      %434 = vsyncadd %s400, 16
    $region335: #{tpu_custom_call.1} parent=1 // pred_fallthru
      _
    %s435 = smul.u32 1, 1
    %s436 = sshll.u32 %s435, 4
    %437 = dma.done [#allocation3], %s436
    %s438 = sshll.u32 %s435, 4
    %439 = dma.done %s58, %s438
    %s440 = sshll.u32 %s435, 4
    %441 = dma.done %s96, %s440
    %s442 = sshll.u32 %s435, 4
    %443 = dma.done %s134, %s442
    %s444 = sshll.u32 %s435, 4
    %445 = dma.done %s172, %s444
    %s446 = sshll.u32 %s435, 4
    %447 = dma.done %s210, %s446
    %s448 = sshll.u32 %s435, 4
    %449 = dma.done %s248, %s448
    %s450 = sshll.u32 %s435, 4
    %451 = dma.done %s286, %s450
    %s452 = sshll.u32 %s435, 4
    %453 = dma.done %s324, %s452
    %s454 = sshll.u32 %s435, 4
    %455 = dma.done %s362, %s454
    %s456 = sshll.u32 %s435, 4
    %457 = dma.done %s400, %s456
    %v458 = vld [vmem:[%s2] sm:$0x1]
    %v459 = vld [vmem:[#allocation2] sm:$0xff]
    %v460 = vld [vmem:[#allocation2 + $0x8] sm:$0x7]
    %vm461 = vcmask 130048
    %v462 = vsel %vm461, %v459, 0.0
    %vm463 = vcmask 124928
    %v464 = vsel %vm463, %v460, 0.0
    %v465 = vadd.f32 %v462, %v464
    %v466 = vrot.slane %v465, 4
    %v467 = vadd.f32 %v465, %v466
    %v468 = vrot.slane %v467, 2
    %v469 = vadd.f32 %v467, %v468
    %v470 = vrot.slane %v469, 1
    %v471 = vadd.f32 %v469, %v470
    %v472 = vadd.f32 %v458, %v471
    %vm473 = vcmask 122880
    %474 = vst.msk [vmem:[#allocation6] sm:$0x1] %vm473, %v472
    // Predicated region
    $region336: #{tpu_custom_call.1} parent=1 // pred_check
      _
    $region337: #{tpu_custom_call.1} parent=1 // pred_check_branch
      %476 = sbr.rel (0) target = $region339
    $region338: #{tpu_custom_call.1} parent=1 // pred_region
      %478 = vsyncadd [#allocation7], 0
      %s480 = sshll.u32 [#allocation6], 4
      %s481 = int_to_ptr.vmem [resolvable:$true] %s480
      %s482 = sshll.u32 %s3, 4
      %s483 = int_to_ptr.hbm [resolvable:$true] %s482
      %485 = dma.vmem_to_hbm [thread:$0]  %s481, 16, %s483, [#allocation7]
    $region339: #{tpu_custom_call.1} parent=1 // pred_fallthru
      _
    // Predicated region
    $region340: #{tpu_custom_call.1} parent=1 // pred_check
      _
    $region341: #{tpu_custom_call.1} parent=1 // pred_check_branch
      %487 = sbr.rel (0) target = $region343
    $region342: #{tpu_custom_call.1} parent=1 // pred_region
      %489 = dma.done [#allocation7], 16
    $region343: #{tpu_custom_call.1} parent=1 // pred_fallthru
      _
    %490 = vsyncpa [#allocation7], 1
  %491 = vsyncmov [#allocation3]
  %s492 = vpop.sfrf %491
  %p493 = scmp.eq.s32.totalorder %s492, 0
  %p494 = pneg %p493
  %496 = shalt.err (%p494)
  %s497 = scalar_lea.sflag [#allocation3], 1
  %498 = vsyncmov %s497
  %s499 = vpop.sfrf %498
  %p500 = scmp.eq.s32.totalorder %s499, 0
  %p501 = pneg %p500
  %503 = shalt.err (%p501)
  %s504 = scalar_lea.sflag [#allocation3], 2
  %505 = vsyncmov %s504
  %s506 = vpop.sfrf %505
  %p507 = scmp.eq.s32.totalorder %s506, 0
  %p508 = pneg %p507
  %510 = shalt.err (%p508)
  %s511 = scalar_lea.sflag [#allocation3], 3
  %512 = vsyncmov %s511
  %s513 = vpop.sfrf %512
  %p514 = scmp.eq.s32.totalorder %s513, 0
  %p515 = pneg %p514
  %517 = shalt.err (%p515)
  %s518 = scalar_lea.sflag [#allocation3], 4
  %519 = vsyncmov %s518
  %s520 = vpop.sfrf %519
  %p521 = scmp.eq.s32.totalorder %s520, 0
  %p522 = pneg %p521
  %524 = shalt.err (%p522)
  %s525 = scalar_lea.sflag [#allocation3], 5
  %526 = vsyncmov %s525
  %s527 = vpop.sfrf %526
  %p528 = scmp.eq.s32.totalorder %s527, 0
  %p529 = pneg %p528
  %531 = shalt.err (%p529)
  %s532 = scalar_lea.sflag [#allocation3], 6
  %533 = vsyncmov %s532
  %s534 = vpop.sfrf %533
  %p535 = scmp.eq.s32.totalorder %s534, 0
  %p536 = pneg %p535
  %538 = shalt.err (%p536)
  %s539 = scalar_lea.sflag [#allocation3], 7
  %540 = vsyncmov %s539
  %s541 = vpop.sfrf %540
  %p542 = scmp.eq.s32.totalorder %s541, 0
  %p543 = pneg %p542
  %545 = shalt.err (%p543)
  %s546 = scalar_lea.sflag [#allocation3], 8
  %547 = vsyncmov %s546
  %s548 = vpop.sfrf %547
  %p549 = scmp.eq.s32.totalorder %s548, 0
  %p550 = pneg %p549
  %552 = shalt.err (%p550)
  %s553 = scalar_lea.sflag [#allocation3], 9
  %554 = vsyncmov %s553
  %s555 = vpop.sfrf %554
  %p556 = scmp.eq.s32.totalorder %s555, 0
  %p557 = pneg %p556
  %559 = shalt.err (%p557)
  %s560 = scalar_lea.sflag [#allocation3], 10
  %561 = vsyncmov %s560
  %s562 = vpop.sfrf %561
  %p563 = scmp.eq.s32.totalorder %s562, 0
  %p564 = pneg %p563
  %566 = shalt.err (%p564)

</llo_original>
